<compile_context>
chip_gen: v7x
topology: tpu7x:2x2x1
jax: 0.10.0
libtpu: 0.0.40
codegen_flags: <defaults>
</compile_context>

<pallas_src>
import functools

import jax
import jax.numpy as jnp
from jax.experimental import pallas as pl
from jax.experimental.pallas import tpu as pltpu


def _round_up(x, m):
    return ((x + m - 1) // m) * m


def _pick_tile_nodes(num_nodes, k, d, o_pad, nf_itemsize, out_itemsize,
                     budget_bytes=24 * 1024 * 1024):
    """Largest node tile (multiple of 8) whose double-buffered working set fits."""
    n8 = max(8, _round_up(num_nodes, 8))
    fixed = 2 * d * o_pad * 4 + 2 * o_pad * 4          # resident weight + bias
    for tn in (2048, 1024, 512, 256, 128, 64, 32, 16, 8):
        if tn > n8:
            continue
        per_tile = 2 * tn * k * d * nf_itemsize + 2 * tn * o_pad * out_itemsize
        if fixed + per_tile <= budget_bytes:
            return tn
    return 8


def _neighbor_agg_kernel(nf_ref, w_ref, *rest, aggr_method, inv_k, use_bias):
    """Per-node-tile body: neighbor reduction (f32) + MXU matmul + bias.

    nf_ref:  [TN, K, D]   neighbor features tile (VMEM)
    w_ref:   [D, O_pad]   projection weight (VMEM, resident)
    b_ref:   [1, O_pad]   bias (only when use_bias)
    out_ref: [TN, O_pad]  output tile (VMEM)
    """
    if use_bias:
        b_ref, out_ref = rest
    else:
        (out_ref,) = rest

    nf = nf_ref[...].astype(jnp.float32)               # f32 accumulation
    if aggr_method == "max":
        aggr = jnp.max(nf, axis=1)                     # [TN, D]
    else:
        aggr = jnp.sum(nf, axis=1)                     # [TN, D] ('sum' and 'mean')

    hidden = jnp.dot(aggr, w_ref[...].astype(jnp.float32),
                     preferred_element_type=jnp.float32)   # [TN, O_pad] on MXU
    if aggr_method == "mean":
        hidden = hidden * jnp.float32(inv_k)           # scale the smaller tensor
    if use_bias:
        hidden = hidden + b_ref[...].astype(jnp.float32)
    out_ref[...] = hidden.astype(out_ref.dtype)


def neighbor_aggregator(neighbor_features, weight, bias=None, aggr_method="mean"):
    """JAX wrapper mirroring NeighborAggregator.forward."""
    assert aggr_method in ("mean", "sum", "max")
    n, k, d = neighbor_features.shape
    d_w, o = weight.shape
    assert d == d_w
    use_bias = bias is not None
    out_dtype = neighbor_features.dtype
    nf_isz = jnp.dtype(neighbor_features.dtype).itemsize
    out_isz = jnp.dtype(out_dtype).itemsize

    # Lane-dense output: pad output_dim to a multiple of 128.
    o_pad = max(128, _round_up(o, 128))

    # Node tiling sized for VMEM (works across v5e/v6e/v7x).
    tn = _pick_tile_nodes(n, k, d, o_pad, nf_isz, out_isz)
    n_pad = _round_up(max(n, tn), tn)

    nf = neighbor_features
    if n_pad != n:
        nf = jnp.pad(nf, ((0, n_pad - n), (0, 0), (0, 0)))
    w = weight
    if o_pad != o:
        w = jnp.pad(w, ((0, 0), (0, o_pad - o)))

    args = [nf, w]
    in_specs = [
        pl.BlockSpec((tn, k, d), lambda i: (i, 0, 0)),       # streamed node tiles
        pl.BlockSpec((d, o_pad), lambda i: (0, 0)),          # resident weight
    ]
    if use_bias:
        b2 = bias.reshape(1, o)
        if o_pad != o:
            b2 = jnp.pad(b2, ((0, 0), (0, o_pad - o)))
        args.append(b2)
        in_specs.append(pl.BlockSpec((1, o_pad), lambda i: (0, 0)))

    kernel = functools.partial(_neighbor_agg_kernel, aggr_method=aggr_method,
                               inv_k=1.0 / k, use_bias=use_bias)

    flops = 2 * n_pad * d * o_pad + n_pad * k * d
    bytes_accessed = (n_pad * k * d * nf_isz
                      + d * o_pad * jnp.dtype(w.dtype).itemsize
                      + n_pad * o_pad * out_isz
                      + (o_pad * 4 if use_bias else 0))

    out_padded = pl.pallas_call(
        kernel,
        out_shape=jax.ShapeDtypeStruct((n_pad, o_pad), out_dtype),
        grid=(n_pad // tn,),
        in_specs=in_specs,
        out_specs=pl.BlockSpec((tn, o_pad), lambda i: (i, 0)),
        compiler_params=pltpu.CompilerParams(
            dimension_semantics=("parallel",),
            vmem_limit_bytes=40 * 1024 * 1024),
        cost_estimate=pl.CostEstimate(flops=flops, transcendentals=0,
                                      bytes_accessed=bytes_accessed),
    )(*args)

    return out_padded[:n, :o]


if __name__ == "__main__":
    # Small shapes consistent with the module's forward:
    #   neighbor_features: [num_nodes, num_neighbors, input_dim]
    num_nodes, num_neighbors = 8, 4
    input_dim, output_dim = 16, 32

    key = jax.random.PRNGKey(0)
    k_nf, k_w = jax.random.split(key)

    neighbor_features = jax.random.normal(
        k_nf, (num_nodes, num_neighbors, input_dim), dtype=jnp.float32)

    # Deterministic kaiming_normal_-style init for weight [input_dim, output_dim].
    std = (2.0 / output_dim) ** 0.5
    weight = std * jax.random.normal(k_w, (input_dim, output_dim),
                                     dtype=jnp.float32)
    bias = jnp.zeros((output_dim,), dtype=jnp.float32)   # zeros_ init

    # mean + bias path
    out = neighbor_aggregator(neighbor_features, weight, bias, aggr_method="mean")
    out = jax.block_until_ready(out)
    ref = jnp.mean(neighbor_features, axis=1) @ weight + bias
    assert out.shape == (num_nodes, output_dim)
    assert jnp.allclose(out, ref, atol=1e-5, rtol=1e-5)

    # sum, no-bias path (exercises the bias-free spec)
    out2 = jax.block_until_ready(
        neighbor_aggregator(neighbor_features, weight, None, aggr_method="sum"))
    ref2 = jnp.sum(neighbor_features, axis=1) @ weight
    assert jnp.allclose(out2, ref2, atol=1e-5, rtol=1e-5)

    print("KERNEL_OK")
</pallas_src>

<mosaic_0001>
module attributes {stable_mosaic.version = 11 : i64} {
  func.func @_neighbor_agg_kernel(%arg0: i32, %arg1: memref<8x4x16xf32, #tpu.memory_space<vmem>>, %arg2: memref<16x128xf32, #tpu.memory_space<vmem>>, %arg3: memref<1x128xf32, #tpu.memory_space<vmem>>, %arg4: memref<8x128xf32, #tpu.memory_space<vmem>>) attributes {dimension_semantics = [#tpu.dimension_semantics<parallel>], iteration_bounds = array<i64: 1>, scalar_prefetch = 0 : i64, scratch_operands = 0 : i64, tpu.core_type = #tpu.core_type<tc>, window_params = [{transform_indices = @transform_0, window_bounds = array<i64: 8, 4, 16>}, {pipeline_mode = #tpu.pipeline_mode<synchronous>, transform_indices = @transform_1, window_bounds = array<i64: 16, 128>}, {pipeline_mode = #tpu.pipeline_mode<synchronous>, transform_indices = @transform_2, window_bounds = array<i64: 1, 128>}, {transform_indices = @transform_3, window_bounds = array<i64: 8, 128>}]} {
    %c0 = arith.constant 0 : index
    %c0_0 = arith.constant 0 : index
    %c0_1 = arith.constant 0 : index
    %0 = vector.load %arg1[%c0, %c0_0, %c0_1] : memref<8x4x16xf32, #tpu.memory_space<vmem>>, vector<8x4x16xf32>
    %cst = arith.constant dense<0.000000e+00> : vector<8x16xf32>
    %1 = vector.multi_reduction <add>, %0, %cst [1] : vector<8x4x16xf32> to vector<8x16xf32>
    %c0_2 = arith.constant 0 : index
    %c0_3 = arith.constant 0 : index
    %2 = vector.load %arg2[%c0_2, %c0_3] : memref<16x128xf32, #tpu.memory_space<vmem>>, vector<16x128xf32>
    %cst_4 = arith.constant dense<0.000000e+00> : vector<8x128xf32>
    %3 = tpu.matmul %1, %2, %cst_4 {dimension_numbers = #tpu.dot_dimension_numbers<[1], [0], [0], [1], [0, 0, 1, 1], [], []>} : vector<8x16xf32>, vector<16x128xf32>, vector<8x128xf32> -> vector<8x128xf32>
    %cst_5 = arith.constant 2.500000e-01 : f32
    %4 = vector.broadcast %cst_5 : f32 to vector<8x128xf32>
    %5 = arith.mulf %3, %4 : vector<8x128xf32>
    %c0_6 = arith.constant 0 : index
    %c0_7 = arith.constant 0 : index
    %6 = vector.load %arg3[%c0_6, %c0_7] : memref<1x128xf32, #tpu.memory_space<vmem>>, vector<1x128xf32>
    %7 = vector.broadcast %6 : vector<1x128xf32> to vector<8x128xf32>
    %8 = arith.addf %5, %7 : vector<8x128xf32>
    %c0_8 = arith.constant 0 : index
    %c0_9 = arith.constant 0 : index
    %9 = vector.load %arg4[%c0_8, %c0_9] : memref<8x128xf32, #tpu.memory_space<vmem>>, vector<8x128xf32>
    tpu.vector_store %arg4[%c0_8, %c0_9], %8 {strides = array<i32>} : memref<8x128xf32, #tpu.memory_space<vmem>>, vector<8x128xf32>,
    return
  }
  func.func @transform_0(%arg0: i32) -> (i32, i32, i32) {
    %c0_i32 = arith.constant 0 : i32
    %c0_i32_0 = arith.constant 0 : i32
    %c0_i32_1 = arith.constant 0 : i32
    return %arg0, %c0_i32, %c0_i32_0 : i32, i32, i32
  }
  func.func @transform_1(%arg0: i32) -> (i32, i32) {
    %c0_i32 = arith.constant 0 : i32
    %c0_i32_0 = arith.constant 0 : i32
    %c0_i32_1 = arith.constant 0 : i32
    return %c0_i32, %c0_i32_0 : i32, i32
  }
  func.func @transform_2(%arg0: i32) -> (i32, i32) {
    %c0_i32 = arith.constant 0 : i32
    %c0_i32_0 = arith.constant 0 : i32
    %c0_i32_1 = arith.constant 0 : i32
    return %c0_i32, %c0_i32_0 : i32, i32
  }
  func.func @transform_3(%arg0: i32) -> (i32, i32) {
    %c0_i32 = arith.constant 0 : i32
    %c0_i32_0 = arith.constant 0 : i32
    return %arg0, %c0_i32 : i32, i32
  }
}

</mosaic_0001>

<llo_original>
// kernel: tpu_custom_call.1
$region0: #{tpu_custom_call.1}
  #allocation0 [shape = 'u32[]', space=smem, size = 0x4, offset = 0x4, fixed_abs, tag = 'smem constant byte address 0x4 - core index']
  #allocation1 [shape = 'u32[144,128]{1,0:T(1,128)}', space=vmem, size = 0x12000, scoped, tag = 'internal scratch']
  %s0 = inlined_call_operand.hbm [shape: f32[8,4,16], index: 0, kind: input, shape index: {}]
  %s1 = inlined_call_operand.hbm [shape: f32[16,128], index: 1, kind: input, shape index: {}]
  %s2 = inlined_call_operand.vmem [shape: f32[1,128], index: 2, kind: input, shape index: {}]
  %s3 = inlined_call_operand.hbm [shape: f32[8,128], index: 3, kind: output, shape index: {}]
  %s4 = sld [smem:[#allocation0]]
  $region30: #{tpu_custom_call.1} parent=0
    _
  %s6 = ssub.s32 1, %s4
  %s7 = scalar_select 0, %s6, %s4
  $region1: #{tpu_custom_call.1} parent=0
    #allocation2 [shape = 'u8[16384]{0}', space=vmem, size = 0x4000, scoped, tag = 'input window, operand 0, single buffered']
    #allocation3 [shape = 's32[1]{0}', space=sflag, size = 0x4, scoped, tag = 'scoped memory for tpu_custom_call.1']
    #allocation4 [shape = 's32[1]{0}', space=sflag, size = 0x4, scoped, tag = 'scoped memory for tpu_custom_call.1']
    #allocation5 [shape = 'u8[8192]{0}', space=vmem, size = 0x2000, scoped, tag = 'input window, operand 1, single buffered']
    #allocation6 [shape = 's32[1]{0}', space=sflag, size = 0x4, scoped, tag = 'scoped memory for tpu_custom_call.1']
    #allocation7 [shape = 'u8[4096]{0}', space=vmem, size = 0x1000, scoped, tag = 'output window, operand 0, single buffered']
    %8 = vsyncpa [#allocation3], 0
    %9 = vsyncpa [#allocation6], 0
    %10 = vsyncpa [#allocation4], 0
    // Predicated region
    $region2: #{tpu_custom_call.1} parent=1 // pred_check
      _
    $region3: #{tpu_custom_call.1} parent=1 // pred_check_branch
      %12 = sbr.rel (0) target = $region5
    $region4: #{tpu_custom_call.1} parent=1 // pred_region
      %s14 = ssub.s32 512, 512
      %15 = vsyncadd [#allocation3], %s14
      %s16 = sshll.u32 [#allocation2], 4
      %s17 = int_to_ptr.vmem [resolvable:$true] %s16
      %22 = dma.hbm_to_vmem [thread:$0]  %s0, 512, %s17, [#allocation3], 64, 64, 4
    $region5: #{tpu_custom_call.1} parent=1 // pred_fallthru
      _
    // Predicated region
    $region6: #{tpu_custom_call.1} parent=1 // pred_check
      _
    $region7: #{tpu_custom_call.1} parent=1 // pred_check_branch
      %24 = sbr.rel (0) target = $region9
    $region8: #{tpu_custom_call.1} parent=1 // pred_region
      %s26 = ssub.s32 256, 256
      %27 = vsyncadd [#allocation6], %s26
      %s28 = sshll.u32 [#allocation5], 4
      %s29 = int_to_ptr.vmem [resolvable:$true] %s28
      %34 = dma.hbm_to_vmem [thread:$0]  %s1, 256, %s29, [#allocation6], 128, 128, 8
    $region9: #{tpu_custom_call.1} parent=1 // pred_fallthru
      _
    // Predicated region
    $region10: #{tpu_custom_call.1} parent=1 // pred_check
      _
    $region11: #{tpu_custom_call.1} parent=1 // pred_check_branch
      %36 = sbr.rel (0) target = $region13
    $region12: #{tpu_custom_call.1} parent=1 // pred_region
      _
    $region13: #{tpu_custom_call.1} parent=1 // pred_fallthru
      _
    // Predicated region
    $region14: #{tpu_custom_call.1} parent=1 // pred_check
      _
    $region15: #{tpu_custom_call.1} parent=1 // pred_check_branch
      %38 = sbr.rel (0) target = $region17
    $region16: #{tpu_custom_call.1} parent=1 // pred_region
      %39 = dma.done [#allocation3], 512
    $region17: #{tpu_custom_call.1} parent=1 // pred_fallthru
      _
    // Predicated region
    $region18: #{tpu_custom_call.1} parent=1 // pred_check
      _
    $region19: #{tpu_custom_call.1} parent=1 // pred_check_branch
      %41 = sbr.rel (0) target = $region21
    $region20: #{tpu_custom_call.1} parent=1 // pred_region
      %42 = dma.done [#allocation6], 256
    $region21: #{tpu_custom_call.1} parent=1 // pred_fallthru
      _
    %v43 = vld [vmem:[#allocation2] sm:$0xf]
    %v44 = vld [vmem:[#allocation2 + $0x4] sm:$0xf]
    %v45 = vld [vmem:[#allocation2 + $0x8] sm:$0xf]
    %v46 = vld [vmem:[#allocation2 + $0xc] sm:$0xf]
    %v47 = vld [vmem:[#allocation2 + $0x10] sm:$0xf]
    %v48 = vld [vmem:[#allocation2 + $0x14] sm:$0xf]
    %v49 = vld [vmem:[#allocation2 + $0x18] sm:$0xf]
    %v50 = vld [vmem:[#allocation2 + $0x1c] sm:$0xf]
    %vm51 = vcmask 125952
    %v52 = vsel %vm51, %v43, 0.0
    %v53 = vrot.slane %v52, 4
    %v54 = vadd.f32 %v52, %v53
    %v55 = vrot.slane %v54, 2
    %v56 = vadd.f32 %v54, %v55
    %v57 = vrot.slane %v56, 1
    %v58 = vadd.f32 %v56, %v57
    %v59 = vsel %vm51, %v44, 0.0
    %v60 = vrot.slane %v59, 4
    %v61 = vadd.f32 %v59, %v60
    %v62 = vrot.slane %v61, 2
    %v63 = vadd.f32 %v61, %v62
    %v64 = vrot.slane %v63, 1
    %v65 = vadd.f32 %v63, %v64
    %v66 = vsel %vm51, %v45, 0.0
    %v67 = vrot.slane %v66, 4
    %v68 = vadd.f32 %v66, %v67
    %v69 = vrot.slane %v68, 2
    %v70 = vadd.f32 %v68, %v69
    %v71 = vrot.slane %v70, 1
    %v72 = vadd.f32 %v70, %v71
    %v73 = vsel %vm51, %v46, 0.0
    %v74 = vrot.slane %v73, 4
    %v75 = vadd.f32 %v73, %v74
    %v76 = vrot.slane %v75, 2
    %v77 = vadd.f32 %v75, %v76
    %v78 = vrot.slane %v77, 1
    %v79 = vadd.f32 %v77, %v78
    %v80 = vsel %vm51, %v47, 0.0
    %v81 = vrot.slane %v80, 4
    %v82 = vadd.f32 %v80, %v81
    %v83 = vrot.slane %v82, 2
    %v84 = vadd.f32 %v82, %v83
    %v85 = vrot.slane %v84, 1
    %v86 = vadd.f32 %v84, %v85
    %v87 = vsel %vm51, %v48, 0.0
    %v88 = vrot.slane %v87, 4
    %v89 = vadd.f32 %v87, %v88
    %v90 = vrot.slane %v89, 2
    %v91 = vadd.f32 %v89, %v90
    %v92 = vrot.slane %v91, 1
    %v93 = vadd.f32 %v91, %v92
    %v94 = vsel %vm51, %v49, 0.0
    %v95 = vrot.slane %v94, 4
    %v96 = vadd.f32 %v94, %v95
    %v97 = vrot.slane %v96, 2
    %v98 = vadd.f32 %v96, %v97
    %v99 = vrot.slane %v98, 1
    %v100 = vadd.f32 %v98, %v99
    %v101 = vsel %vm51, %v50, 0.0
    %v102 = vrot.slane %v101, 4
    %v103 = vadd.f32 %v101, %v102
    %v104 = vrot.slane %v103, 2
    %v105 = vadd.f32 %v103, %v104
    %v106 = vrot.slane %v105, 1
    %v107 = vadd.f32 %v105, %v106
    %v108 = vld [vmem:[#allocation5] sm:$0xff]
    %v109 = vld [vmem:[#allocation5 + $0x8] sm:$0xff]
    %vm118 = vcmask 1041409
    %v119 = vsel %vm118, %v65, %v58
    %vm120 = vcmask 1042434
    %v121 = vsel %vm120, %v72, %v119
    %vm122 = vcmask 1043459
    %v123 = vsel %vm122, %v79, %v121
    %vm124 = vcmask 1044484
    %v125 = vsel %vm124, %v86, %v123
    %vm126 = vcmask 1045509
    %v127 = vsel %vm126, %v93, %v125
    %vm128 = vcmask 1046534
    %v129 = vsel %vm128, %v100, %v127
    %vm130 = vcmask 1047559
    %v131 = vsel %vm130, %v107, %v129
    %vm132 = vcmask 130048
    %v133 = vsel %vm132, %v131, 0
    %135 = vmatprep.subr.mxu0 0.0
    %136 = vmatpush1.msra.mxu0 %v108
    %137 = vmatprep.subr.mxu0 0.0
    %138 = vmatpush1.msra.mxu0 %v109
    %139 = vmatprep.subr.mxu0 0.0
    %140 = vmatpush1.msra.mxu0 0.0
    %141 = vmatprep.subr.mxu0 0.0
    %142 = vmatpush1.msra.mxu0 0.0
    %143 = vmatprep.subr.mxu0 0.0
    %144 = vmatpush1.msra.mxu0 0.0
    %145 = vmatprep.subr.mxu0 0.0
    %146 = vmatpush1.msra.mxu0 0.0
    %147 = vmatprep.subr.mxu0 0.0
    %148 = vmatpush1.msra.mxu0 0.0
    %149 = vmatprep.subr.mxu0 0.0
    %150 = vmatpush1.msra.mxu0 0.0
    %151 = vmatprep.subr.mxu0 0.0
    %152 = vmatpush1.msra.mxu0 0.0
    %153 = vmatprep.subr.mxu0 0.0
    %154 = vmatpush1.msra.mxu0 0.0
    %155 = vmatprep.subr.mxu0 0.0
    %156 = vmatpush1.msra.mxu0 0.0
    %157 = vmatprep.subr.mxu0 0.0
    %158 = vmatpush1.msra.mxu0 0.0
    %159 = vmatprep.subr.mxu0 0.0
    %160 = vmatpush1.msra.mxu0 0.0
    %161 = vmatprep.subr.mxu0 0.0
    %162 = vmatpush1.msra.mxu0 0.0
    %163 = vmatprep.subr.mxu0 0.0
    %164 = vmatpush1.msra.mxu0 0.0
    %165 = vmatprep.subr.mxu0 0.0
    %166 = vmatpush1.msra.mxu0 0.0
    %167 = vmatprep.subr.mxu0 0.0
    %168 = vmatpush1.msra.mxu0 0.0
    %169 = vmatprep.subr.mxu0 0.0
    %170 = vmatpush1.msra.mxu0 0.0
    %171 = vmatprep.subr.mxu0 0.0
    %172 = vmatpush1.msra.mxu0 0.0
    %173 = vmatprep.subr.mxu0 0.0
    %174 = vmatpush1.msra.mxu0 0.0
    %175 = vmatprep.subr.mxu0 0.0
    %176 = vmatpush1.msra.mxu0 0.0
    %177 = vmatprep.subr.mxu0 0.0
    %178 = vmatpush1.msra.mxu0 0.0
    %179 = vmatprep.subr.mxu0 0.0
    %180 = vmatpush1.msra.mxu0 0.0
    %181 = vmatprep.subr.mxu0 0.0
    %182 = vmatpush1.msra.mxu0 0.0
    %183 = vmatprep.subr.mxu0 0.0
    %184 = vmatpush1.msra.mxu0 0.0
    %185 = vmatprep.subr.mxu0 0.0
    %186 = vmatpush1.msra.mxu0 0.0
    %187 = vmatprep.subr.mxu0 0.0
    %188 = vmatpush1.msra.mxu0 0.0
    %189 = vmatprep.subr.mxu0 0.0
    %190 = vmatpush1.msra.mxu0 0.0
    %191 = vmatprep.subr.mxu0 0.0
    %192 = vmatpush1.msra.mxu0 0.0
    %193 = vmatprep.subr.mxu0 0.0
    %194 = vmatpush1.msra.mxu0 0.0
    %195 = vmatprep.subr.mxu0 0.0
    %196 = vmatpush1.msra.mxu0 0.0
    %197 = vmatprep.subr.mxu0 0.0
    %198 = vmatpush1.msra.mxu0 0.0
    %199 = vmatprep.mubr.f32.mxu0 0.0
    %200 = vmatmul.mubr.f32.gmra.mrb[0].mxu0 %v133
    %v201 = vpop.f32.mrb[0].mxu0
    %v202 = vadd.f32 0.0, %v201
    %v203 = vpop.f32.mrb[0].mxu0
    %204 = vdwg.mxu0
    %v205 = vmul.f32 %v202, 0.25
    %v206 = vld [vmem:[%s2] sm:$0x1]
    %v208 = vlaneseq
    %v209 = vshrl.u32 %v208, 7
    %v210 = vsub.s32 0, %v209
    %v211 = vrot.slane %v206, %v210
    %v213 = vadd.f32 %v205, %v211
    %214 = vst [vmem:[#allocation7] sm:$0xff] %v213
    // Predicated region
    $region22: #{tpu_custom_call.1} parent=1 // pred_check
      _
    $region23: #{tpu_custom_call.1} parent=1 // pred_check_branch
      %216 = sbr.rel (0) target = $region25
    $region24: #{tpu_custom_call.1} parent=1 // pred_region
      %s218 = ssub.s32 128, 128
      %219 = vsyncadd [#allocation4], %s218
      %s221 = sshll.u32 [#allocation7], 4
      %s222 = int_to_ptr.vmem [resolvable:$true] %s221
      %224 = dma.vmem_to_hbm [thread:$0]  %s222, 128, %s3, [#allocation4]
    $region25: #{tpu_custom_call.1} parent=1 // pred_fallthru
      _
    // Predicated region
    $region26: #{tpu_custom_call.1} parent=1 // pred_check
      _
    $region27: #{tpu_custom_call.1} parent=1 // pred_check_branch
      %226 = sbr.rel (0) target = $region29
    $region28: #{tpu_custom_call.1} parent=1 // pred_region
      %227 = dma.done [#allocation4], 128
    $region29: #{tpu_custom_call.1} parent=1 // pred_fallthru
      _
    %228 = vsyncpa [#allocation3], 1
    %229 = vsyncpa [#allocation6], 1
    %230 = vsyncpa [#allocation4], 1

</llo_original>
